<compile_context>
chip_gen: v6e
topology: v6e:2x2x1
jax: 0.10.0
libtpu: 0.0.40
codegen_flags: <defaults>
</compile_context>

<pallas_src>
import functools

import jax
import jax.numpy as jnp
from jax.experimental import pallas as pl
from jax.experimental.pallas import tpu as pltpu

_LANE = 128


def _sublane_multiple(*dtypes):
    """Native sublane tile height for the narrowest dtype (f32:8, bf16:16, int8:32)."""
    sub = 8
    for dt in dtypes:
        item = jnp.dtype(dt).itemsize
        sub = max(sub, 8 * max(1, 4 // max(1, item)))
    return sub


def _device_budget():
    """Best-effort per-generation (per-input block budget bytes, scoped VMEM limit)."""
    budget, limit = 2 << 20, None               # safe under every default scoped limit
    try:
        kind = jax.devices()[0].device_kind.lower()
    except Exception:
        return budget, limit
    if "v7" in kind:
        budget, limit = 6 << 20, 48 << 20       # 64 MiB physical VMEM per TensorCore
    elif "v6" in kind:
        budget, limit = 8 << 20, 64 << 20       # 128 MiB physical VMEM
    elif "v5" in kind:
        if "lite" in kind or "v5e" in kind:
            budget, limit = 2 << 20, 32 << 20   # keep steps ~5 us at 0.82 TB/s
        else:
            budget, limit = 8 << 20, 64 << 20   # v5p
    return budget, limit


def _den_term(a, b, p):
    if p == 2:
        return a * a + b * b                    # stays on the VPU multiply slot
    if p == 1:
        return a + b
    # Non-integer p lowers to exp(p*log(x)); zeros/negatives behave like torch.pow.
    return a ** p + b ** p


# --------------------------------------------------------------------------
# Packed path: F % 128 == 0, inputs viewed as [N, R, 128].
# Grid = (batch tiles [parallel], row tiles [arbitrary reduction axis]).
# --------------------------------------------------------------------------
def _dice_packed_kernel(p_ref, t_ref, loss_ref, num_acc, den_acc, *,
                        smooth, p, r_total, tile_r, mask_last):
    r = pl.program_id(1)
    last = pl.num_programs(1) - 1

    @pl.when(r == 0)
    def _():
        num_acc[...] = jnp.zeros_like(num_acc)
        den_acc[...] = jnp.zeros_like(den_acc)

    # Load in native dtype, cast to f32 on-chip (halves HBM bytes for bf16).
    pv = p_ref[...].astype(jnp.float32)          # (tile_n, tile_r, 128)
    tv = t_ref[...].astype(jnp.float32)

    def accumulate(masked):
        a, b = pv, tv
        if masked:
            # Mask out-of-range feature rows BEFORE any arithmetic so OOB
            # garbage can never reach the sums.
            row = jax.lax.broadcasted_iota(jnp.int32, a.shape, 1) + r * tile_r
            valid = row < r_total
            a = jnp.where(valid, a, 0.0)
            b = jnp.where(valid, b, 0.0)
        # Lane-dense partials: reduce only the sublane (row) axis per tile;
        # the cross-lane (XLU) reduce happens once in the finalize step.
        num_acc[...] += jnp.sum(a * b, axis=1)
        den_acc[...] += jnp.sum(_den_term(a, b, p), axis=1)

    if mask_last:
        @pl.when(r != last)
        def _():
            accumulate(False)

        @pl.when(r == last)
        def _():
            accumulate(True)
    else:
        accumulate(False)

    @pl.when(r == last)
    def _():
        num = jnp.sum(num_acc[...], axis=1, keepdims=True) + smooth   # (tile_n, 1)
        den = jnp.sum(den_acc[...], axis=1, keepdims=True) + smooth
        loss_ref[...] = 1.0 - num / den


def _dice_packed(pf, tf, smooth, p, budget, limit, item, sub):
    n, f = pf.shape
    r_total = f // _LANE
    p3 = pf.reshape(n, r_total, _LANE)           # free view (row-major)
    t3 = tf.reshape(n, r_total, _LANE)

    # Padding-aware tile selection: one minimal slab per batch row is
    # (sub, 128) elements, which is exactly how VMEM stores it.
    row_chunk = sub * _LANE * item
    if n * row_chunk <= budget:
        tile_n = n
    else:
        tile_n = max(8, ((budget // row_chunk) // 8) * 8)   # out block needs %8
    nb = pl.cdiv(n, tile_n)

    cap_r = max(sub, ((budget // (tile_n * _LANE * item)) // sub) * sub)
    if r_total <= cap_r:
        tile_r, mask_last = r_total, False       # full dim -> always a legal block
    else:
        tile_r = None
        t = cap_r
        while t >= sub:                          # prefer a divisor: no mask at all
            if r_total % t == 0:
                tile_r = t
                break
            t -= sub
        if tile_r is None:
            tile_r = cap_r
        mask_last = (r_total % tile_r) != 0
    nr = pl.cdiv(r_total, tile_r)

    kernel = functools.partial(
        _dice_packed_kernel, smooth=smooth, p=p,
        r_total=r_total, tile_r=tile_r, mask_last=mask_last)

    return pl.pallas_call(
        kernel,
        # Padded to nb*tile_n rows so every output block is in-bounds; the
        # wrapper slices back to N.
        out_shape=jax.ShapeDtypeStruct((nb * tile_n, 1), jnp.float32),
        grid_spec=pltpu.PrefetchScalarGridSpec(
            num_scalar_prefetch=0,
            grid=(nb, nr),
            in_specs=[
                pl.BlockSpec((tile_n, tile_r, _LANE), lambda b, r: (b, r, 0)),
                pl.BlockSpec((tile_n, tile_r, _LANE), lambda b, r: (b, r, 0)),
            ],
            out_specs=pl.BlockSpec((tile_n, 1), lambda b, r: (b, 0)),
            scratch_shapes=[
                pltpu.VMEM((tile_n, _LANE), jnp.float32),   # per-lane num partials
                pltpu.VMEM((tile_n, _LANE), jnp.float32),   # per-lane den partials
            ],
        ),
        compiler_params=pltpu.CompilerParams(
            dimension_semantics=("parallel", "arbitrary"),
            vmem_limit_bytes=limit,
        ),
    )(p3, t3)


# --------------------------------------------------------------------------
# Fallback path: F not a multiple of 128.  2-D [N, F] lane-tiled streaming
# with a lane mask on the (single) ragged last tile.
# --------------------------------------------------------------------------
def _dice_flat_kernel(p_ref, t_ref, loss_ref, num_acc, den_acc, *,
                      smooth, p, feat, tile_f, mask_last):
    k = pl.program_id(0)
    last = pl.num_programs(0) - 1

    @pl.when(k == 0)
    def _():
        num_acc[...] = jnp.zeros_like(num_acc)
        den_acc[...] = jnp.zeros_like(den_acc)

    pv = p_ref[...].astype(jnp.float32)          # (n, tile_f)
    tv = t_ref[...].astype(jnp.float32)

    def accumulate(masked):
        a, b = pv, tv
        if masked:
            col = jax.lax.broadcasted_iota(jnp.int32, a.shape, 1) + k * tile_f
            valid = col < feat
            a = jnp.where(valid, a, 0.0)
            b = jnp.where(valid, b, 0.0)
        num_acc[...] += jnp.sum(a * b, axis=1, keepdims=True)
        den_acc[...] += jnp.sum(_den_term(a, b, p), axis=1, keepdims=True)

    if mask_last:
        @pl.when(k != last)
        def _():
            accumulate(False)

        @pl.when(k == last)
        def _():
            accumulate(True)
    else:
        accumulate(False)

    @pl.when(k == last)
    def _():
        loss_ref[...] = 1.0 - (num_acc[...] + smooth) / (den_acc[...] + smooth)


def _dice_flat(pf, tf, smooth, p, budget, limit, item, sub):
    n, f = pf.shape
    n_pad = ((n + sub - 1) // sub) * sub         # padding-aware sublane extent
    cols_cap = max(_LANE, ((budget // (n_pad * item)) // _LANE) * _LANE)
    if f <= cols_cap:
        tile_f, mask_last = f, False             # full dim -> legal even if < 128
    else:
        tile_f, mask_last = cols_cap, True       # no 128-multiple divides a ragged F
    nk = pl.cdiv(f, tile_f)

    kernel = functools.partial(
        _dice_flat_kernel, smooth=smooth, p=p,
        feat=f, tile_f=tile_f, mask_last=mask_last)

    return pl.pallas_call(
        kernel,
        out_shape=jax.ShapeDtypeStruct((n, 1), jnp.float32),
        grid_spec=pltpu.PrefetchScalarGridSpec(
            num_scalar_prefetch=0,
            grid=(nk,),
            in_specs=[
                pl.BlockSpec((n, tile_f), lambda k: (0, k)),
                pl.BlockSpec((n, tile_f), lambda k: (0, k)),
            ],
            out_specs=pl.BlockSpec((n, 1), lambda k: (0, 0)),
            scratch_shapes=[
                pltpu.VMEM((n, 1), jnp.float32),
                pltpu.VMEM((n, 1), jnp.float32),
            ],
        ),
        compiler_params=pltpu.CompilerParams(
            dimension_semantics=("arbitrary",),
            vmem_limit_bytes=limit,
        ),
    )(pf, tf)


# --------------------------------------------------------------------------
# Public entry point (forward of BinaryDiceLoss).
# --------------------------------------------------------------------------
def binary_dice_loss(predict, target, smooth=1.0, p=2, reduction="mean",
                     block_bytes=None, vmem_limit_bytes=None):
    assert predict.shape[0] == target.shape[0], "predict & target batch size don't match"
    if reduction not in ("mean", "sum", "none"):
        raise Exception("Unexpected reduction {}".format(reduction))

    n = predict.shape[0]
    pf = predict.reshape(n, -1)                  # views, no copy, native dtype
    tf = target.reshape(n, -1)
    f = pf.shape[1]

    smooth = float(smooth)
    p = int(p) if float(p).is_integer() else float(p)

    dev_budget, dev_limit = _device_budget()
    budget = dev_budget if block_bytes is None else int(block_bytes)
    limit = dev_limit if vmem_limit_bytes is None else int(vmem_limit_bytes)
    item = max(jnp.dtype(pf.dtype).itemsize, jnp.dtype(tf.dtype).itemsize)
    sub = _sublane_multiple(pf.dtype, tf.dtype)

    if f == 0:
        loss = jnp.zeros((n,), jnp.float32)      # num = den = smooth -> loss 0
    elif f % _LANE == 0:
        loss = _dice_packed(pf, tf, smooth, p, budget, limit, item, sub)[:n, 0]
    else:
        loss = _dice_flat(pf, tf, smooth, p, budget, limit, item, sub)[:n, 0]

    # Final batch reduction over N floats: negligible, done in the wrapper so
    # the kernel output stays uniform (per-row loss) across all tilings.
    if reduction == "mean":
        return jnp.sum(loss) / n
    if reduction == "sum":
        return jnp.sum(loss)
    return loss


# --------------------------------------------------------------------------
# Reference + self-test
# --------------------------------------------------------------------------
def _ref_binary_dice_loss(predict, target, smooth=1.0, p=2, reduction="mean"):
    n = predict.shape[0]
    pf = predict.reshape(n, -1).astype(jnp.float32)
    tf = target.reshape(n, -1).astype(jnp.float32)
    num = jnp.sum(pf * tf, axis=1) + smooth
    den = jnp.sum(pf ** p + tf ** p, axis=1) + smooth
    loss = 1.0 - num / den
    if reduction == "mean":
        return loss.mean()
    if reduction == "sum":
        return loss.sum()
    return loss


if __name__ == "__main__":
    key = jax.random.PRNGKey(0)
    k1, k2, k3, k4, k5, k6, k7, k8 = jax.random.split(key, 8)

    # Primary shapes: sigmoid-like probabilities vs binary mask (NCHW).
    predict = jax.nn.sigmoid(jax.random.normal(k1, (2, 4, 16, 16), jnp.float32))
    target = (jax.random.uniform(k2, (2, 4, 16, 16)) > 0.5).astype(jnp.float32)

    for red in ("mean", "sum", "none"):
        out = jax.block_until_ready(
            binary_dice_loss(predict, target, smooth=1.0, p=2, reduction=red))
        ref = _ref_binary_dice_loss(predict, target, smooth=1.0, p=2, reduction=red)
        assert jnp.allclose(out, ref, rtol=1e-5, atol=1e-6), (red, out, ref)

    # bf16 inputs: native-dtype streaming, cast to f32 inside the kernel.
    out = jax.block_until_ready(
        binary_dice_loss(predict.astype(jnp.bfloat16), target.astype(jnp.bfloat16)))
    ref = _ref_binary_dice_loss(predict.astype(jnp.bfloat16), target.astype(jnp.bfloat16))
    assert jnp.allclose(out, ref, rtol=1e-5, atol=1e-5), ("bf16", out, ref)

    # Packed path, forced multi row-tile with a ragged last tile (sublane mask).
    p2 = jax.nn.sigmoid(jax.random.normal(k3, (2, 4, 24, 16), jnp.float32))   # F=1536, R=12
    t2 = (jax.random.uniform(k4, (2, 4, 24, 16)) > 0.5).astype(jnp.float32)
    out = jax.block_until_ready(
        binary_dice_loss(p2, t2, reduction="none", block_bytes=8 << 10))
    ref = _ref_binary_dice_loss(p2, t2, reduction="none")
    assert jnp.allclose(out, ref, rtol=1e-5, atol=1e-6), ("ragged-R", out, ref)

    # Packed path with batch tiling (parallel batch axis, ragged last batch tile).
    p3 = jax.nn.sigmoid(jax.random.normal(k5, (20, 1, 16, 16), jnp.float32))  # F=256
    t3 = (jax.random.uniform(k6, (20, 1, 16, 16)) > 0.5).astype(jnp.float32)
    out = jax.block_until_ready(
        binary_dice_loss(p3, t3, reduction="mean", block_bytes=64 << 10))
    ref = _ref_binary_dice_loss(p3, t3, reduction="mean")
    assert jnp.allclose(out, ref, rtol=1e-5, atol=1e-6), ("batch-tiled", out, ref)

    # Fallback path: F not a multiple of 128, forced multi-tile lane masking.
    p4 = jax.nn.sigmoid(jax.random.normal(k7, (2, 3, 10, 10), jnp.float32))   # F=300
    t4 = (jax.random.uniform(k8, (2, 3, 10, 10)) > 0.5).astype(jnp.float32)
    out = jax.block_until_ready(
        binary_dice_loss(p4, t4, reduction="none", block_bytes=4 << 10))
    ref = _ref_binary_dice_loss(p4, t4, reduction="none")
    assert jnp.allclose(out, ref, rtol=1e-5, atol=1e-6), ("ragged-F", out, ref)

    print("KERNEL_OK")
</pallas_src>

<mosaic_0001>
module attributes {stable_mosaic.version = 11 : i64} {
  func.func @_dice_packed_kernel(%arg0: i32, %arg1: i32, %arg2: memref<2x8x128xf32, #tpu.memory_space<vmem>>, %arg3: memref<2x8x128xf32, #tpu.memory_space<vmem>>, %arg4: memref<2x1xf32, #tpu.memory_space<vmem>>, %arg5: memref<2x128xf32, #tpu.memory_space<vmem>>, %arg6: memref<2x128xf32, #tpu.memory_space<vmem>>) attributes {dimension_semantics = [#tpu.dimension_semantics<parallel>, #tpu.dimension_semantics<arbitrary>], iteration_bounds = array<i64: 1, 1>, scalar_prefetch = 0 : i64, scratch_operands = 2 : i64, tpu.core_type = #tpu.core_type<tc>, window_params = [{transform_indices = @transform_0, window_bounds = array<i64: 2, 8, 128>}, {transform_indices = @transform_1, window_bounds = array<i64: 2, 8, 128>}, {transform_indices = @transform_2, window_bounds = array<i64: 2, 1>}]} {
    %c0_i32 = arith.constant 0 : i32
    %0 = arith.cmpi eq, %arg1, %c0_i32 : i32
    %1 = arith.extui %0 : i1 to i32
    %c0_i32_0 = arith.constant 0 : i32
    %2 = arith.cmpi ne, %1, %c0_i32_0 : i32
    scf.if %2 {
      %cst_17 = arith.constant 0.000000e+00 : f32
      %20 = vector.broadcast %cst_17 : f32 to vector<2x128xf32>
      %c0_18 = arith.constant 0 : index
      %c0_19 = arith.constant 0 : index
      %21 = vector.load %arg5[%c0_18, %c0_19] : memref<2x128xf32, #tpu.memory_space<vmem>>, vector<2x128xf32>
      tpu.vector_store %arg5[%c0_18, %c0_19], %20 {strides = array<i32>} : memref<2x128xf32, #tpu.memory_space<vmem>>, vector<2x128xf32>,
      %cst_20 = arith.constant 0.000000e+00 : f32
      %22 = vector.broadcast %cst_20 : f32 to vector<2x128xf32>
      %c0_21 = arith.constant 0 : index
      %c0_22 = arith.constant 0 : index
      %23 = vector.load %arg6[%c0_21, %c0_22] : memref<2x128xf32, #tpu.memory_space<vmem>>, vector<2x128xf32>
      tpu.vector_store %arg6[%c0_21, %c0_22], %22 {strides = array<i32>} : memref<2x128xf32, #tpu.memory_space<vmem>>, vector<2x128xf32>,
    } else {
    }
    %c0 = arith.constant 0 : index
    %c0_1 = arith.constant 0 : index
    %c0_2 = arith.constant 0 : index
    %3 = vector.load %arg2[%c0, %c0_1, %c0_2] : memref<2x8x128xf32, #tpu.memory_space<vmem>>, vector<2x8x128xf32>
    %c0_3 = arith.constant 0 : index
    %c0_4 = arith.constant 0 : index
    %c0_5 = arith.constant 0 : index
    %4 = vector.load %arg3[%c0_3, %c0_4, %c0_5] : memref<2x8x128xf32, #tpu.memory_space<vmem>>, vector<2x8x128xf32>
    %c0_6 = arith.constant 0 : index
    %c0_7 = arith.constant 0 : index
    %5 = vector.load %arg5[%c0_6, %c0_7] : memref<2x128xf32, #tpu.memory_space<vmem>>, vector<2x128xf32>
    %6 = arith.mulf %3, %4 : vector<2x8x128xf32>
    %cst = arith.constant dense<0.000000e+00> : vector<2x128xf32>
    %7 = vector.multi_reduction <add>, %6, %cst [1] : vector<2x8x128xf32> to vector<2x128xf32>
    %8 = arith.addf %5, %7 : vector<2x128xf32>
    %c0_8 = arith.constant 0 : index
    %c0_9 = arith.constant 0 : index
    %9 = vector.load %arg5[%c0_8, %c0_9] : memref<2x128xf32, #tpu.memory_space<vmem>>, vector<2x128xf32>
    tpu.vector_store %arg5[%c0_8, %c0_9], %8 {strides = array<i32>} : memref<2x128xf32, #tpu.memory_space<vmem>>, vector<2x128xf32>,
    %c0_10 = arith.constant 0 : index
    %c0_11 = arith.constant 0 : index
    %10 = vector.load %arg6[%c0_10, %c0_11] : memref<2x128xf32, #tpu.memory_space<vmem>>, vector<2x128xf32>
    %11 = arith.mulf %3, %3 : vector<2x8x128xf32>
    %12 = arith.mulf %4, %4 : vector<2x8x128xf32>
    %13 = arith.addf %11, %12 : vector<2x8x128xf32>
    %cst_12 = arith.constant dense<0.000000e+00> : vector<2x128xf32>
    %14 = vector.multi_reduction <add>, %13, %cst_12 [1] : vector<2x8x128xf32> to vector<2x128xf32>
    %15 = arith.addf %10, %14 : vector<2x128xf32>
    %c0_13 = arith.constant 0 : index
    %c0_14 = arith.constant 0 : index
    %16 = vector.load %arg6[%c0_13, %c0_14] : memref<2x128xf32, #tpu.memory_space<vmem>>, vector<2x128xf32>
    tpu.vector_store %arg6[%c0_13, %c0_14], %15 {strides = array<i32>} : memref<2x128xf32, #tpu.memory_space<vmem>>, vector<2x128xf32>,
    %c0_i32_15 = arith.constant 0 : i32
    %17 = arith.cmpi eq, %arg1, %c0_i32_15 : i32
    %18 = arith.extui %17 : i1 to i32
    %c0_i32_16 = arith.constant 0 : i32
    %19 = arith.cmpi ne, %18, %c0_i32_16 : i32
    scf.if %19 {
      %c0_17 = arith.constant 0 : index
      %c0_18 = arith.constant 0 : index
      %20 = vector.load %arg5[%c0_17, %c0_18] : memref<2x128xf32, #tpu.memory_space<vmem>>, vector<2x128xf32>
      %cst_19 = arith.constant dense<0.000000e+00> : vector<2xf32>
      %21 = vector.multi_reduction <add>, %20, %cst_19 [1] : vector<2x128xf32> to vector<2xf32>
      %22 = vector.shape_cast %21 : vector<2xf32> to vector<2x1xf32>
      %cst_20 = arith.constant 1.000000e+00 : f32
      %23 = vector.broadcast %cst_20 : f32 to vector<2x1xf32>
      %24 = arith.addf %22, %23 : vector<2x1xf32>
      %c0_21 = arith.constant 0 : index
      %c0_22 = arith.constant 0 : index
      %25 = vector.load %arg6[%c0_21, %c0_22] : memref<2x128xf32, #tpu.memory_space<vmem>>, vector<2x128xf32>
      %cst_23 = arith.constant dense<0.000000e+00> : vector<2xf32>
      %26 = vector.multi_reduction <add>, %25, %cst_23 [1] : vector<2x128xf32> to vector<2xf32>
      %27 = vector.shape_cast %26 : vector<2xf32> to vector<2x1xf32>
      %cst_24 = arith.constant 1.000000e+00 : f32
      %28 = vector.broadcast %cst_24 : f32 to vector<2x1xf32>
      %29 = arith.addf %27, %28 : vector<2x1xf32>
      %30 = arith.divf %24, %29 : vector<2x1xf32>
      %cst_25 = arith.constant 1.000000e+00 : f32
      %31 = vector.broadcast %cst_25 : f32 to vector<2x1xf32>
      %32 = arith.subf %31, %30 : vector<2x1xf32>
      %c0_26 = arith.constant 0 : index
      %c0_27 = arith.constant 0 : index
      %33 = vector.load %arg4[%c0_26, %c0_27] : memref<2x1xf32, #tpu.memory_space<vmem>>, vector<2x1xf32>
      tpu.vector_store %arg4[%c0_26, %c0_27], %32 {strides = array<i32>} : memref<2x1xf32, #tpu.memory_space<vmem>>, vector<2x1xf32>,
    } else {
    }
    return
  }
  func.func @transform_0(%arg0: i32, %arg1: i32) -> (i32, i32, i32) {
    %c0_i32 = arith.constant 0 : i32
    %c0_i32_0 = arith.constant 0 : i32
    return %arg0, %arg1, %c0_i32 : i32, i32, i32
  }
  func.func @transform_1(%arg0: i32, %arg1: i32) -> (i32, i32, i32) {
    %c0_i32 = arith.constant 0 : i32
    %c0_i32_0 = arith.constant 0 : i32
    return %arg0, %arg1, %c0_i32 : i32, i32, i32
  }
  func.func @transform_2(%arg0: i32, %arg1: i32) -> (i32, i32) {
    %c0_i32 = arith.constant 0 : i32
    %c0_i32_0 = arith.constant 0 : i32
    return %arg0, %c0_i32 : i32, i32
  }
}

</mosaic_0001>

<llo_original>
// kernel: tpu_custom_call.1
$region0: #{tpu_custom_call.1}
  #allocation0 [shape = 'u32[]', space=smem, size = 0x4, offset = 0x4, fixed_abs, tag = 'smem constant byte address 0x4 - core index']
  #allocation1 [shape = 'u32[144,128]{1,0:T(1,128)}', space=vmem, size = 0x12000, scoped, tag = 'internal scratch']
  #allocation2 [shape = 'f32[2,128]{1,0:T(2,128)}', space=vmem, size = 0x400, scoped, tag = 'scratch operand']
  #allocation3 [shape = 'f32[2,128]{1,0:T(2,128)}', space=vmem, size = 0x400, scoped, tag = 'scratch operand']
  %s0 = inlined_call_operand.hbm [shape: f32[2,8,128], index: 0, kind: input, shape index: {}]
  %s1 = inlined_call_operand.hbm [shape: f32[2,8,128], index: 1, kind: input, shape index: {}]
  %s2 = inlined_call_operand.vmem [shape: f32[2,1], index: 2, kind: output, shape index: {}]
  %s3 = sld [smem:[#allocation0]]
  $region34: #{tpu_custom_call.1} parent=0
    _
  %s5 = ssub.s32 1, %s3
  %s6 = scalar_select 0, %s5, %s3
  $region1: #{tpu_custom_call.1} parent=0
    #allocation4 [shape = 'u8[8192]{0}', space=vmem, size = 0x2000, scoped, tag = 'input window, operand 0, single buffered']
    #allocation5 [shape = 's32[1]{0}', space=sflag, size = 0x4, scoped, tag = 'scoped memory for tpu_custom_call.1']
    #allocation6 [shape = 'u8[8192]{0}', space=vmem, size = 0x2000, scoped, tag = 'input window, operand 1, single buffered']
    #allocation7 [shape = 's32[1]{0}', space=sflag, size = 0x4, scoped, tag = 'scoped memory for tpu_custom_call.1']
    %7 = vsyncpa [#allocation5], 0
    %8 = vsyncpa [#allocation7], 0
    // Predicated region
    $region2: #{tpu_custom_call.1} parent=1 // pred_check
      _
    $region3: #{tpu_custom_call.1} parent=1 // pred_check_branch
      %10 = sbr.rel (0) target = $region5
    $region4: #{tpu_custom_call.1} parent=1 // pred_region
      %s12 = ssub.s32 256, 256
      %13 = vsyncadd [#allocation5], %s12
      %s14 = sshll.u32 [#allocation4], 4
      %s15 = int_to_ptr.vmem [resolvable:$true] %s14
      %20 = dma.hbm_to_vmem [thread:$0]  %s0, 256, %s15, [#allocation5], 128, 128, 8
    $region5: #{tpu_custom_call.1} parent=1 // pred_fallthru
      _
    // Predicated region
    $region6: #{tpu_custom_call.1} parent=1 // pred_check
      _
    $region7: #{tpu_custom_call.1} parent=1 // pred_check_branch
      %22 = sbr.rel (0) target = $region9
    $region8: #{tpu_custom_call.1} parent=1 // pred_region
      %s24 = ssub.s32 256, 256
      %25 = vsyncadd [#allocation7], %s24
      %s26 = sshll.u32 [#allocation6], 4
      %s27 = int_to_ptr.vmem [resolvable:$true] %s26
      %32 = dma.hbm_to_vmem [thread:$0]  %s1, 256, %s27, [#allocation7], 128, 128, 8
    $region9: #{tpu_custom_call.1} parent=1 // pred_fallthru
      _
    // Predicated region
    $region10: #{tpu_custom_call.1} parent=1 // pred_check
      _
    $region11: #{tpu_custom_call.1} parent=1 // pred_check_branch
      %34 = sbr.rel (0) target = $region13
    $region12: #{tpu_custom_call.1} parent=1 // pred_region
      %35 = dma.done [#allocation5], 256
    $region13: #{tpu_custom_call.1} parent=1 // pred_fallthru
      _
    // Predicated region
    $region14: #{tpu_custom_call.1} parent=1 // pred_check
      _
    $region15: #{tpu_custom_call.1} parent=1 // pred_check_branch
      %37 = sbr.rel (0) target = $region17
    $region16: #{tpu_custom_call.1} parent=1 // pred_region
      %38 = dma.done [#allocation7], 256
    $region17: #{tpu_custom_call.1} parent=1 // pred_fallthru
      _
    %p39 = scmp.eq.s32.totalorder 0, 0
    // Predicated region
    $region18: #{tpu_custom_call.1} parent=1 // pred_check
      %p40 = pneg %p39
    $region19: #{tpu_custom_call.1} parent=1 // pred_check_branch
      %42 = sbr.rel (%p40) target = $region21
    $region20: #{tpu_custom_call.1} parent=1 // pred_region
      %43 = vst [vmem:[#allocation2] sm:$0x3] 0.0
      %44 = vst [vmem:[#allocation3] sm:$0x3] 0.0
    $region21: #{tpu_custom_call.1} parent=1 // pred_fallthru
      _
    %v45 = vld [vmem:[#allocation4] sm:$0xff]
    %v46 = vld [vmem:[#allocation4 + $0x8] sm:$0xff]
    %v47 = vld [vmem:[#allocation6] sm:$0xff]
    %v48 = vld [vmem:[#allocation6 + $0x8] sm:$0xff]
    %v49 = vld [vmem:[#allocation2] sm:$0x3]
    %v50 = vmul.f32 %v45, %v47
    %v51 = vmul.f32 %v46, %v48
    %v52 = vrot.slane %v50, 4
    %v53 = vadd.f32 %v50, %v52
    %v54 = vrot.slane %v53, 2
    %v55 = vadd.f32 %v53, %v54
    %v56 = vrot.slane %v55, 1
    %v57 = vadd.f32 %v55, %v56
    %v58 = vrot.slane %v51, 4
    %v59 = vadd.f32 %v51, %v58
    %v60 = vrot.slane %v59, 2
    %v61 = vadd.f32 %v59, %v60
    %v62 = vrot.slane %v61, 1
    %v63 = vadd.f32 %v61, %v62
    %vm66 = vcmask 1041409
    %v67 = vsel %vm66, %v63, %v57
    %v69 = vadd.f32 %v49, %v67
    %70 = vst [vmem:[#allocation2] sm:$0x3] %v69
    %v71 = vld [vmem:[#allocation3] sm:$0x3]
    %v72 = vmul.f32 %v45, %v45
    %v73 = vmul.f32 %v46, %v46
    %v74 = vmul.f32 %v47, %v47
    %v75 = vmul.f32 %v48, %v48
    %v76 = vadd.f32 %v72, %v74
    %v77 = vadd.f32 %v73, %v75
    %v78 = vrot.slane %v76, 4
    %v79 = vadd.f32 %v76, %v78
    %v80 = vrot.slane %v79, 2
    %v81 = vadd.f32 %v79, %v80
    %v82 = vrot.slane %v81, 1
    %v83 = vadd.f32 %v81, %v82
    %v84 = vrot.slane %v77, 4
    %v85 = vadd.f32 %v77, %v84
    %v86 = vrot.slane %v85, 2
    %v87 = vadd.f32 %v85, %v86
    %v88 = vrot.slane %v87, 1
    %v89 = vadd.f32 %v87, %v88
    %v92 = vsel %vm66, %v89, %v83
    %v94 = vadd.f32 %v71, %v92
    %95 = vst [vmem:[#allocation3] sm:$0x3] %v94
    // Predicated region
    $region22: #{tpu_custom_call.1} parent=1 // pred_check
      %p96 = pneg %p39
    $region23: #{tpu_custom_call.1} parent=1 // pred_check_branch
      %98 = sbr.rel (%p96) target = $region25
    $region24: #{tpu_custom_call.1} parent=1 // pred_region
      %v99 = vld [vmem:[#allocation2] sm:$0x3]
      %vm100 = vcmask 1041408
      %v101 = vsel %vm100, %v99, 0.0
      %102 = vadd.xlane.f32.xlu0 %v101
      %v103 = vpop.xlane.xlu0 %102
      %v104 = vadd.f32 %v103, 1.0
      %v105 = vld [vmem:[#allocation3] sm:$0x3]
      %v106 = vsel %vm100, %v105, 0.0
      %107 = vadd.xlane.f32.xlu0 %v106
      %v108 = vpop.xlane.xlu0 %107
      %v109 = vadd.f32 %v108, 1.0
      %v110 = vrcp.pop %v109
      %v111 = vmul.f32 %v104, %v110
      %v112 = vsub.f32 1.0, %v111
      %vm113 = vcmask 1024
      %114 = vst.msk [vmem:[%s2] sm:$0x3] %vm113, %v112
    $region25: #{tpu_custom_call.1} parent=1 // pred_fallthru
      _
    // Predicated region
    $region26: #{tpu_custom_call.1} parent=1 // pred_check
      _
    $region27: #{tpu_custom_call.1} parent=1 // pred_check_branch
      %116 = sbr.rel (0) target = $region29
    $region28: #{tpu_custom_call.1} parent=1 // pred_region
      _
    $region29: #{tpu_custom_call.1} parent=1 // pred_fallthru
      _
    // Predicated region
    $region30: #{tpu_custom_call.1} parent=1 // pred_check
      _
    $region31: #{tpu_custom_call.1} parent=1 // pred_check_branch
      %118 = sbr.rel (0) target = $region33
    $region32: #{tpu_custom_call.1} parent=1 // pred_region
      _
    $region33: #{tpu_custom_call.1} parent=1 // pred_fallthru
      _
    %119 = vsyncpa [#allocation5], 1
    %120 = vsyncpa [#allocation7], 1

</llo_original>
